<compile_context>
chip_gen: v7x
topology: tpu7x:2x2x1
jax: 0.10.0
libtpu: 0.0.40
codegen_flags: <defaults>
</compile_context>

<pallas_src>
import functools

import jax
import jax.numpy as jnp
import numpy as np
from jax.experimental import pallas as pl
from jax.experimental.pallas import tpu as pltpu

PD_EPS = 1e-6    # F.pairwise_distance default eps (added elementwise to x - y)
LOG_EPS = 1e-10  # eps inside torch.log(qij + 1e-10)


def _tsne_kernel(zT_ref, i_ref, j_ref, pij_ref, out_ref, rawq_ref, s_ref,
                 *, n_dim, n_valid, p_chunk):
    t = pl.program_id(0)
    n_tiles = pl.num_programs(0)
    d_pad, p_pad = zT_ref.shape
    tb = i_ref.shape[1]
    n_chunks = p_pad // p_chunk

    @pl.when(t == 0)
    def _init():
        s_ref[0] = 0.0                        # S = sum_b 1 / (1 + dist_b^2)

    i_row = i_ref[...]                        # (1, tb) int32
    j_row = j_ref[...]                        # (1, tb) int32

    # ---- fused gather: z_i - z_j via an in-kernel one-hot-difference matmul
    def delta_for(zt_chunk, row_offset):
        p_c = zt_chunk.shape[1]
        rows = jax.lax.broadcasted_iota(jnp.int32, (p_c, tb), 0) + row_offset
        ohd = ((rows == i_row).astype(jnp.float32)
               - (rows == j_row).astype(jnp.float32))        # exact {-1, 0, +1}
        return jnp.dot(zt_chunk, ohd, preferred_element_type=jnp.float32)

    if n_chunks == 1:
        dT = delta_for(zT_ref[...], 0)                        # (d_pad, tb)
    else:
        def body(c, acc):
            base = pl.multiple_of(c * p_chunk, p_chunk)       # 128-aligned lane slice
            return acc + delta_for(zT_ref[:, pl.ds(base, p_chunk)], c * p_chunk)
        dT = jax.lax.fori_loop(0, n_chunks, body,
                               jnp.zeros((d_pad, tb), jnp.float32))

    # F.pairwise_distance adds eps elementwise to (z_i - z_j); only on real dims.
    dim_id = jax.lax.broadcasted_iota(jnp.int32, dT.shape, 0)
    d = dT + jnp.where(dim_id < n_dim, PD_EPS, 0.0)
    distances = jnp.sum(d * d, axis=0, keepdims=True)         # (1, tb), no sqrt trip

    # Valid-lane mask computed in-kernel (padding lanes contribute 0 to S).
    lane = jax.lax.broadcasted_iota(jnp.int32, (1, tb), 1)
    valid = (lane + t * tb) < n_valid
    raw_q = jnp.where(valid, 1.0 / (1.0 + distances), 0.0)    # (1, tb)

    s_ref[0] = s_ref[0] + jnp.sum(raw_q)
    rawq_ref[t] = raw_q                                       # cache for finalize

    @pl.when(t == n_tiles - 1)
    def _finalize():
        inv_s = 1.0 / s_ref[0]                                # exact divide (accuracy)
        q = rawq_ref[...] * inv_s                             # (n_tiles, 1, tb)
        log_q = jnp.log(q + LOG_EPS)
        p = pij_ref[...]                                      # (n_tiles, 1, tb), 0 on pad
        xlogy = jnp.where(p > 0.0, p * jnp.log(p), 0.0)
        out_ref[0, 0] = jnp.sum(xlogy - p * log_q)


def tsne_forward(z, pij, i, j, *, batch_tile=512, points_chunk=512):
    """Pallas implementation of TSNE.forward(pij, i, j) with embedding weights `z`."""
    n_points, n_dim = z.shape
    b = int(pij.shape[0])

    # ---- tile geometry ------------------------------------------------------
    bt = max(128, (int(batch_tile) // 128) * 128)        # 128-aligned batch tile
    tb = min(bt, pl.cdiv(b, 128) * 128)
    b_pad = pl.cdiv(b, tb) * tb
    n_tiles = b_pad // tb

    d_pad = pl.cdiv(n_dim, 8) * 8                        # sublane-aligned embed dim

    pc = max(128, (int(points_chunk) // 128) * 128)      # 128-aligned points chunk
    p128 = pl.cdiv(n_points, 128) * 128
    p_chunk = min(pc, p128)
    p_pad = pl.cdiv(p128, p_chunk) * p_chunk

    # ---- operands (small O(B) / O(P*D) arrays only; no O(P*B) materialization)
    zT = (jnp.zeros((d_pad, p_pad), jnp.float32)
          .at[:n_dim, :n_points].set(z.astype(jnp.float32).T))
    i_pad = jnp.zeros((1, b_pad), jnp.int32).at[0, :b].set(i.astype(jnp.int32))
    j_pad = jnp.zeros((1, b_pad), jnp.int32).at[0, :b].set(j.astype(jnp.int32))
    pij_pad = (jnp.zeros((b_pad,), jnp.float32)
               .at[:b].set(pij.astype(jnp.float32))
               .reshape(n_tiles, 1, tb))

    kernel = functools.partial(_tsne_kernel, n_dim=n_dim, n_valid=b, p_chunk=p_chunk)

    # ---- explicit VMEM budget (headroom under v7x's 64 MiB physical) --------
    zt_bytes = d_pad * p_pad * 4
    cache_bytes = n_tiles * 8 * tb * 4            # raw_q cache ((1,tb) rows pad to 8 sublanes)
    pij_bytes = 2 * cache_bytes                   # resident pij (+ pipeline buffer)
    idx_bytes = 2 * 2 * 2 * tb * 4                # i, j tiles, double-buffered
    onehot_bytes = 6 * p_chunk * tb * 4           # in-kernel one-hot temporaries headroom
    est = 2 * zt_bytes + cache_bytes + pij_bytes + idx_bytes + onehot_bytes + (2 << 20)
    vmem_limit = int(min(max(est, 32 << 20), 48 << 20))

    flops = (2 * d_pad + 3) * p_pad * b_pad + 12 * b_pad
    bytes_accessed = zt_bytes + 3 * b_pad * 4 + 4

    out = pl.pallas_call(
        kernel,
        out_shape=jax.ShapeDtypeStruct((1, 1), jnp.float32),
        grid_spec=pltpu.PrefetchScalarGridSpec(
            num_scalar_prefetch=0,
            grid=(n_tiles,),                                         # batch tiles
            in_specs=[
                pl.BlockSpec((d_pad, p_pad), lambda t: (0, 0)),      # zT (VMEM-resident)
                pl.BlockSpec((1, tb), lambda t: (0, t)),             # i indices
                pl.BlockSpec((1, tb), lambda t: (0, t)),             # j indices
                pl.BlockSpec((n_tiles, 1, tb), lambda t: (0, 0, 0)), # pij (finalize only)
            ],
            out_specs=pl.BlockSpec((1, 1), lambda t: (0, 0),
                                   memory_space=pltpu.MemorySpace.SMEM),
            scratch_shapes=[
                pltpu.VMEM((n_tiles, 1, tb), jnp.float32),           # raw_q cache
                pltpu.SMEM((1,), jnp.float32),                       # running S
            ],
        ),
        compiler_params=pltpu.CompilerParams(
            dimension_semantics=("arbitrary",),        # sequential: SMEM acc + cache
            vmem_limit_bytes=vmem_limit,
        ),
        cost_estimate=pl.CostEstimate(flops=flops, transcendentals=2 * b_pad,
                                      bytes_accessed=bytes_accessed),
    )(zT, i_pad, j_pad, pij_pad)
    return out[0, 0]


def tsne_reference(z, pij, i, j):
    """Pure-JAX reference mirroring the PyTorch module."""
    z_i = z[i]
    z_j = z[j]
    d = z_i - z_j + PD_EPS
    dist = jnp.sqrt(jnp.sum(d * d, axis=-1))
    distances = dist ** 2
    qij = 1.0 / (1.0 + distances)
    qij = qij / jnp.sum(qij)
    log_q = jnp.log(qij + LOG_EPS)
    xlogy = jnp.where(pij > 0, pij * jnp.log(pij), 0.0)
    return jnp.sum(xlogy - pij * log_q)


if __name__ == "__main__":
    n_points = 384
    n_dim = 2
    batch = 200

    key = jax.random.PRNGKey(0)
    k_z, k_p, k_i, k_j = jax.random.split(key, 4)

    # nn.Embedding(n_points, n_dim).weight ~ N(0, 1), deterministic init here.
    z = jax.random.normal(k_z, (n_points, n_dim), dtype=jnp.float32)

    # pij: a small probability vector over the sampled pairs.
    pij_raw = jax.random.uniform(k_p, (batch,), dtype=jnp.float32) + 0.1
    pij = pij_raw / jnp.sum(pij_raw)

    i = jax.random.randint(k_i, (batch,), 0, n_points, dtype=jnp.int32)
    j = jax.random.randint(k_j, (batch,), 0, n_points, dtype=jnp.int32)

    ref = tsne_reference(z, pij, i, j)

    # 1) default tiling (single batch tile, single points chunk)
    loss = tsne_forward(z, pij, i, j)
    jax.block_until_ready(loss)
    np.testing.assert_allclose(np.asarray(loss), np.asarray(ref), rtol=1e-5, atol=1e-6)

    # 2) small tiles: exercises multi-tile batch loop + chunked points loop + masking
    loss2 = tsne_forward(z, pij, i, j, batch_tile=128, points_chunk=128)
    jax.block_until_ready(loss2)
    np.testing.assert_allclose(np.asarray(loss2), np.asarray(ref), rtol=1e-5, atol=1e-6)

    print("KERNEL_OK")
</pallas_src>

<mosaic_0001>
module attributes {stable_mosaic.version = 11 : i64} {
  func.func @_tsne_kernel(%arg0: i32, %arg1: memref<8x384xf32, #tpu.memory_space<vmem>>, %arg2: memref<1x256xi32, #tpu.memory_space<vmem>>, %arg3: memref<1x256xi32, #tpu.memory_space<vmem>>, %arg4: memref<1x1x256xf32, #tpu.memory_space<vmem>>, %arg5: memref<1x1xf32, #tpu.memory_space<smem>>, %arg6: memref<1x1x256xf32, #tpu.memory_space<vmem>>, %arg7: memref<1xf32, #tpu.memory_space<smem>>) attributes {dimension_semantics = [#tpu.dimension_semantics<arbitrary>], iteration_bounds = array<i64: 1>, scalar_prefetch = 0 : i64, scratch_operands = 2 : i64, tpu.core_type = #tpu.core_type<tc>, window_params = [{pipeline_mode = #tpu.pipeline_mode<synchronous>, transform_indices = @transform_0, window_bounds = array<i64: 8, 384>}, {transform_indices = @transform_1, window_bounds = array<i64: 1, 256>}, {transform_indices = @transform_2, window_bounds = array<i64: 1, 256>}, {pipeline_mode = #tpu.pipeline_mode<synchronous>, transform_indices = @transform_3, window_bounds = array<i64: 1, 1, 256>}, {transform_indices = @transform_4, window_bounds = array<i64: 1, 1>}]} {
    %c0_i32 = arith.constant 0 : i32
    %0 = arith.cmpi eq, %arg0, %c0_i32 : i32
    %1 = arith.extui %0 : i1 to i32
    %c0_i32_0 = arith.constant 0 : i32
    %2 = arith.cmpi ne, %1, %c0_i32_0 : i32
    scf.if %2 {
      %cst_20 = arith.constant 0.000000e+00 : f32
      %c0_21 = arith.constant 0 : index
      %55 = memref.load %arg7[%c0_21] : memref<1xf32, #tpu.memory_space<smem>>
      memref.store %cst_20, %arg7[%c0_21] : memref<1xf32, #tpu.memory_space<smem>>
    } else {
    }
    %c0 = arith.constant 0 : index
    %c0_1 = arith.constant 0 : index
    %3 = vector.load %arg2[%c0, %c0_1] : memref<1x256xi32, #tpu.memory_space<vmem>>, vector<1x256xi32>
    %c0_2 = arith.constant 0 : index
    %c0_3 = arith.constant 0 : index
    %4 = vector.load %arg3[%c0_2, %c0_3] : memref<1x256xi32, #tpu.memory_space<vmem>>, vector<1x256xi32>
    %c0_4 = arith.constant 0 : index
    %c0_5 = arith.constant 0 : index
    %5 = vector.load %arg1[%c0_4, %c0_5] : memref<8x384xf32, #tpu.memory_space<vmem>>, vector<8x384xf32>
    %6 = tpu.iota {dimensions = array<i32: 0>} : vector<384x256xi32>
    %c0_i32_6 = arith.constant 0 : i32
    %7 = vector.broadcast %c0_i32_6 : i32 to vector<384x256xi32>
    %8 = arith.addi %6, %7 : vector<384x256xi32>
    %9 = vector.broadcast %3 : vector<1x256xi32> to vector<384x256xi32>
    %10 = arith.cmpi eq, %8, %9 : vector<384x256xi32>
    %11 = arith.extui %10 : vector<384x256xi1> to vector<384x256xi32>
    %12 = arith.sitofp %11 : vector<384x256xi32> to vector<384x256xf32>
    %13 = vector.broadcast %4 : vector<1x256xi32> to vector<384x256xi32>
    %14 = arith.cmpi eq, %8, %13 : vector<384x256xi32>
    %15 = arith.extui %14 : vector<384x256xi1> to vector<384x256xi32>
    %16 = arith.sitofp %15 : vector<384x256xi32> to vector<384x256xf32>
    %17 = arith.subf %12, %16 : vector<384x256xf32>
    %cst = arith.constant dense<0.000000e+00> : vector<8x256xf32>
    %18 = tpu.matmul %5, %17, %cst {dimension_numbers = #tpu.dot_dimension_numbers<[1], [0], [0], [1], [0, 0, 1, 1], [], []>} : vector<8x384xf32>, vector<384x256xf32>, vector<8x256xf32> -> vector<8x256xf32>
    %19 = tpu.iota {dimensions = array<i32: 0>} : vector<8x256xi32>
    %c2_i32 = arith.constant 2 : i32
    %20 = vector.broadcast %c2_i32 : i32 to vector<8x256xi32>
    %21 = arith.cmpi slt, %19, %20 : vector<8x256xi32>
    %cst_7 = arith.constant 9.99999997E-7 : f32
    %cst_8 = arith.constant 0.000000e+00 : f32
    %22 = vector.broadcast %cst_7 : f32 to vector<8x256xf32>
    %23 = vector.broadcast %cst_8 : f32 to vector<8x256xf32>
    %24 = arith.select %21, %22, %23 : vector<8x256xi1>, vector<8x256xf32>
    %25 = arith.addf %18, %24 : vector<8x256xf32>
    %26 = arith.mulf %25, %25 : vector<8x256xf32>
    %cst_9 = arith.constant dense<0.000000e+00> : vector<256xf32>
    %27 = vector.multi_reduction <add>, %26, %cst_9 [0] : vector<8x256xf32> to vector<256xf32>
    %28 = vector.shape_cast %27 : vector<256xf32> to vector<1x256xf32>
    %29 = tpu.iota {dimensions = array<i32: 1>} : vector<1x256xi32>
    %c256_i32 = arith.constant 256 : i32
    %30 = arith.muli %arg0, %c256_i32 : i32
    %31 = vector.broadcast %30 : i32 to vector<1x256xi32>
    %32 = arith.addi %29, %31 : vector<1x256xi32>
    %c200_i32 = arith.constant 200 : i32
    %33 = vector.broadcast %c200_i32 : i32 to vector<1x256xi32>
    %34 = arith.cmpi slt, %32, %33 : vector<1x256xi32>
    %cst_10 = arith.constant 1.000000e+00 : f32
    %35 = vector.broadcast %cst_10 : f32 to vector<1x256xf32>
    %36 = arith.addf %35, %28 : vector<1x256xf32>
    %cst_11 = arith.constant 1.000000e+00 : f32
    %37 = vector.broadcast %cst_11 : f32 to vector<1x256xf32>
    %38 = arith.divf %37, %36 : vector<1x256xf32>
    %cst_12 = arith.constant 0.000000e+00 : f32
    %39 = vector.broadcast %cst_12 : f32 to vector<1x256xf32>
    %40 = arith.select %34, %38, %39 : vector<1x256xi1>, vector<1x256xf32>
    %c0_13 = arith.constant 0 : index
    %41 = memref.load %arg7[%c0_13] : memref<1xf32, #tpu.memory_space<smem>>
    %42 = vector.shape_cast %40 : vector<1x256xf32> to vector<1x1x256xf32>
    %cst_14 = arith.constant dense<0.000000e+00> : vector<1xf32>
    %43 = vector.multi_reduction <add>, %42, %cst_14 [1, 2] : vector<1x1x256xf32> to vector<1xf32>
    %44 = vector.shape_cast %43 : vector<1xf32> to vector<1x1x1xf32>
    %45 = vector.extract %44[0, 0, 0] : f32 from vector<1x1x1xf32>
    %46 = arith.addf %41, %45 : f32
    %c0_15 = arith.constant 0 : index
    %47 = memref.load %arg7[%c0_15] : memref<1xf32, #tpu.memory_space<smem>>
    memref.store %46, %arg7[%c0_15] : memref<1xf32, #tpu.memory_space<smem>>
    %48 = arith.index_cast %arg0 : i32 to index
    %c0_16 = arith.constant 0 : index
    %c0_17 = arith.constant 0 : index
    %49 = vector.load %arg6[%48, %c0_16, %c0_17] : memref<1x1x256xf32, #tpu.memory_space<vmem>>, vector<1x1x256xf32>
    %50 = vector.shape_cast %49 : vector<1x1x256xf32> to vector<1x256xf32>
    %51 = vector.shape_cast %40 : vector<1x256xf32> to vector<1x1x256xf32>
    tpu.vector_store %arg6[%48, %c0_16, %c0_17], %51 {strides = array<i32>} : memref<1x1x256xf32, #tpu.memory_space<vmem>>, vector<1x1x256xf32>,
    %c0_i32_18 = arith.constant 0 : i32
    %52 = arith.cmpi eq, %arg0, %c0_i32_18 : i32
    %53 = arith.extui %52 : i1 to i32
    %c0_i32_19 = arith.constant 0 : i32
    %54 = arith.cmpi ne, %53, %c0_i32_19 : i32
    scf.if %54 {
      %c0_20 = arith.constant 0 : index
      %55 = memref.load %arg7[%c0_20] : memref<1xf32, #tpu.memory_space<smem>>
      %cst_21 = arith.constant 1.000000e+00 : f32
      %56 = arith.divf %cst_21, %55 : f32
      %c0_22 = arith.constant 0 : index
      %c0_23 = arith.constant 0 : index
      %c0_24 = arith.constant 0 : index
      %57 = vector.load %arg6[%c0_22, %c0_23, %c0_24] : memref<1x1x256xf32, #tpu.memory_space<vmem>>, vector<1x1x256xf32>
      %58 = vector.broadcast %56 : f32 to vector<1x1x256xf32>
      %59 = arith.mulf %57, %58 : vector<1x1x256xf32>
      %cst_25 = arith.constant 1.000000e-10 : f32
      %60 = vector.broadcast %cst_25 : f32 to vector<1x1x256xf32>
      %61 = arith.addf %59, %60 : vector<1x1x256xf32>
      %62 = math.log %61 : vector<1x1x256xf32>
      %c0_26 = arith.constant 0 : index
      %c0_27 = arith.constant 0 : index
      %c0_28 = arith.constant 0 : index
      %63 = vector.load %arg4[%c0_26, %c0_27, %c0_28] : memref<1x1x256xf32, #tpu.memory_space<vmem>>, vector<1x1x256xf32>
      %cst_29 = arith.constant 0.000000e+00 : f32
      %64 = vector.broadcast %cst_29 : f32 to vector<1x1x256xf32>
      %65 = arith.cmpf ogt, %63, %64 : vector<1x1x256xf32>
      %66 = math.log %63 : vector<1x1x256xf32>
      %67 = arith.mulf %63, %66 : vector<1x1x256xf32>
      %cst_30 = arith.constant 0.000000e+00 : f32
      %68 = vector.broadcast %cst_30 : f32 to vector<1x1x256xf32>
      %69 = arith.select %65, %67, %68 : vector<1x1x256xi1>, vector<1x1x256xf32>
      %70 = arith.mulf %63, %62 : vector<1x1x256xf32>
      %71 = arith.subf %69, %70 : vector<1x1x256xf32>
      %72 = vector.shape_cast %71 : vector<1x1x256xf32> to vector<1x1x1x256xf32>
      %cst_31 = arith.constant dense<0.000000e+00> : vector<1xf32>
      %73 = vector.multi_reduction <add>, %72, %cst_31 [1, 2, 3] : vector<1x1x1x256xf32> to vector<1xf32>
      %74 = vector.shape_cast %73 : vector<1xf32> to vector<1x1x1x1xf32>
      %75 = vector.extract %74[0, 0, 0, 0] : f32 from vector<1x1x1x1xf32>
      %c0_32 = arith.constant 0 : index
      %c0_33 = arith.constant 0 : index
      %76 = memref.load %arg5[%c0_32, %c0_33] : memref<1x1xf32, #tpu.memory_space<smem>>
      memref.store %75, %arg5[%c0_32, %c0_33] : memref<1x1xf32, #tpu.memory_space<smem>>
    } else {
    }
    return
  }
  func.func @transform_0(%arg0: i32) -> (i32, i32) {
    %c0_i32 = arith.constant 0 : i32
    %c0_i32_0 = arith.constant 0 : i32
    %c0_i32_1 = arith.constant 0 : i32
    return %c0_i32, %c0_i32_0 : i32, i32
  }
  func.func @transform_1(%arg0: i32) -> (i32, i32) {
    %c0_i32 = arith.constant 0 : i32
    %c0_i32_0 = arith.constant 0 : i32
    return %c0_i32, %arg0 : i32, i32
  }
  func.func @transform_2(%arg0: i32) -> (i32, i32) {
    %c0_i32 = arith.constant 0 : i32
    %c0_i32_0 = arith.constant 0 : i32
    return %c0_i32, %arg0 : i32, i32
  }
  func.func @transform_3(%arg0: i32) -> (i32, i32, i32) {
    %c0_i32 = arith.constant 0 : i32
    %c0_i32_0 = arith.constant 0 : i32
    %c0_i32_1 = arith.constant 0 : i32
    %c0_i32_2 = arith.constant 0 : i32
    return %c0_i32, %c0_i32_0, %c0_i32_1 : i32, i32, i32
  }
  func.func @transform_4(%arg0: i32) -> (i32, i32) {
    %c0_i32 = arith.constant 0 : i32
    %c0_i32_0 = arith.constant 0 : i32
    %c0_i32_1 = arith.constant 0 : i32
    return %c0_i32, %c0_i32_0 : i32, i32
  }
}

</mosaic_0001>

<llo_original>
// kernel: tpu_custom_call.1
$region0: #{tpu_custom_call.1}
  #allocation0 [shape = 'u32[]', space=smem, size = 0x4, offset = 0x4, fixed_abs, tag = 'smem constant byte address 0x4 - core index']
  #allocation1 [shape = 'u32[144,128]{1,0:T(1,128)}', space=vmem, size = 0x12000, scoped, tag = 'internal scratch']
  #allocation2 [shape = 'f32[1,1,256]{2,1,0:T(1,128)}', space=vmem, size = 0x400, scoped, tag = 'scratch operand']
  #allocation3 [shape = 'f32[1]{0:T(128)}', space=smem, size = 0x200, scoped, tag = 'scratch operand']
  %s0 = inlined_call_operand.hbm [shape: f32[8,384], index: 0, kind: input, shape index: {}]
  %s1 = inlined_call_operand.vmem [shape: s32[1,256], index: 1, kind: input, shape index: {}]
  %s2 = inlined_call_operand.vmem [shape: s32[1,256], index: 2, kind: input, shape index: {}]
  %s3 = inlined_call_operand.vmem [shape: f32[1,1,256], index: 3, kind: input, shape index: {}]
  %s4 = inlined_call_operand.hbm [shape: f32[1,1], index: 4, kind: output, shape index: {}]
  %s5 = sld [smem:[#allocation0]]
  $region38: #{tpu_custom_call.1} parent=0
    _
  %s7 = ssub.s32 1, %s5
  %s8 = scalar_select 0, %s7, %s5
  $region1: #{tpu_custom_call.1} parent=0
    #allocation4 [shape = 'u8[12288]{0}', space=vmem, size = 0x3000, scoped, tag = 'input window, operand 0, single buffered']
    #allocation5 [shape = 's32[1]{0}', space=sflag, size = 0x4, scoped, tag = 'scoped memory for tpu_custom_call.1']
    #allocation6 [shape = 's32[1]{0}', space=sflag, size = 0x4, scoped, tag = 'scoped memory for tpu_custom_call.1']
    #allocation7 [shape = 'u8[512]{0}', space=smem, size = 0x200, scoped, tag = 'output window, operand 0, single buffered']
    %9 = vsyncpa [#allocation5], 0
    %10 = vsyncpa [#allocation6], 0
    // Predicated region
    $region2: #{tpu_custom_call.1} parent=1 // pred_check
      _
    $region3: #{tpu_custom_call.1} parent=1 // pred_check_branch
      %12 = sbr.rel (0) target = $region5
    $region4: #{tpu_custom_call.1} parent=1 // pred_region
      %s14 = ssub.s32 384, 384
      %15 = vsyncadd [#allocation5], %s14
      %s17 = sshll.u32 [#allocation4], 4
      %s18 = int_to_ptr.vmem [resolvable:$true] %s17
      %20 = dma.hbm_to_vmem [thread:$0]  %s0, 384, %s18, [#allocation5]
    $region5: #{tpu_custom_call.1} parent=1 // pred_fallthru
      _
    // Predicated region
    $region6: #{tpu_custom_call.1} parent=1 // pred_check
      _
    $region7: #{tpu_custom_call.1} parent=1 // pred_check_branch
      %22 = sbr.rel (0) target = $region9
    $region8: #{tpu_custom_call.1} parent=1 // pred_region
      _
    $region9: #{tpu_custom_call.1} parent=1 // pred_fallthru
      _
    // Predicated region
    $region10: #{tpu_custom_call.1} parent=1 // pred_check
      _
    $region11: #{tpu_custom_call.1} parent=1 // pred_check_branch
      %24 = sbr.rel (0) target = $region13
    $region12: #{tpu_custom_call.1} parent=1 // pred_region
      _
    $region13: #{tpu_custom_call.1} parent=1 // pred_fallthru
      _
    // Predicated region
    $region14: #{tpu_custom_call.1} parent=1 // pred_check
      _
    $region15: #{tpu_custom_call.1} parent=1 // pred_check_branch
      %26 = sbr.rel (0) target = $region17
    $region16: #{tpu_custom_call.1} parent=1 // pred_region
      _
    $region17: #{tpu_custom_call.1} parent=1 // pred_fallthru
      _
    // Predicated region
    $region18: #{tpu_custom_call.1} parent=1 // pred_check
      _
    $region19: #{tpu_custom_call.1} parent=1 // pred_check_branch
      %28 = sbr.rel (0) target = $region21
    $region20: #{tpu_custom_call.1} parent=1 // pred_region
      %29 = dma.done [#allocation5], 384
    $region21: #{tpu_custom_call.1} parent=1 // pred_fallthru
      _
    %p30 = scmp.eq.s32.totalorder 0, 0
    // Predicated region
    $region22: #{tpu_custom_call.1} parent=1 // pred_check
      %p31 = pneg %p30
    $region23: #{tpu_custom_call.1} parent=1 // pred_check_branch
      %33 = sbr.rel (%p31) target = $region25
    $region24: #{tpu_custom_call.1} parent=1 // pred_region
      %s34 = scalar_lea.smem [#allocation3], 0
      %35 = sst [smem:[%s34]] 0.0
    $region25: #{tpu_custom_call.1} parent=1 // pred_fallthru
      _
    %v36 = vld [vmem:[%s1] sm:$0x3]
    %v37 = vld [vmem:[%s2] sm:$0x3]
    %v38 = vld [vmem:[#allocation4] sm:$0xff]
    %v39 = vld [vmem:[#allocation4 + $0x8] sm:$0xff]
    %v40 = vld [vmem:[#allocation4 + $0x10] sm:$0xff]
    %v41 = vlaneseq
    %v42 = vshrl.u32 %v41, 7
    %v43 = vadd.s32 %v42, 8
    %v44 = vadd.s32 %v42, 16
    %v45 = vadd.s32 %v42, 24
    %v46 = vadd.s32 %v42, 32
    %v47 = vadd.s32 %v42, 40
    %v48 = vadd.s32 %v42, 48
    %v49 = vadd.s32 %v42, 56
    %v50 = vadd.s32 %v42, 64
    %v51 = vadd.s32 %v42, 72
    %v52 = vadd.s32 %v42, 80
    %v53 = vadd.s32 %v42, 88
    %v54 = vadd.s32 %v42, 96
    %v55 = vadd.s32 %v42, 104
    %v56 = vadd.s32 %v42, 112
    %v57 = vadd.s32 %v42, 120
    %v58 = vadd.s32 %v42, 128
    %v59 = vadd.s32 %v42, 136
    %v60 = vadd.s32 %v42, 144
    %v61 = vadd.s32 %v42, 152
    %v62 = vadd.s32 %v42, 160
    %v63 = vadd.s32 %v42, 168
    %v64 = vadd.s32 %v42, 176
    %v65 = vadd.s32 %v42, 184
    %v66 = vadd.s32 %v42, 192
    %v67 = vadd.s32 %v42, 200
    %v68 = vadd.s32 %v42, 208
    %v69 = vadd.s32 %v42, 216
    %v70 = vadd.s32 %v42, 224
    %v71 = vadd.s32 %v42, 232
    %v72 = vadd.s32 %v42, 240
    %v73 = vadd.s32 %v42, 248
    %v74 = vadd.s32 %v42, 256
    %v75 = vadd.s32 %v42, 264
    %v76 = vadd.s32 %v42, 272
    %v77 = vadd.s32 %v42, 280
    %v78 = vadd.s32 %v42, 288
    %v79 = vadd.s32 %v42, 296
    %v80 = vadd.s32 %v42, 304
    %v81 = vadd.s32 %v42, 312
    %v82 = vadd.s32 %v42, 320
    %v83 = vadd.s32 %v42, 328
    %v84 = vadd.s32 %v42, 336
    %v85 = vadd.s32 %v42, 344
    %v86 = vadd.s32 %v42, 352
    %v87 = vadd.s32 %v42, 360
    %v88 = vadd.s32 %v42, 368
    %v89 = vadd.s32 %v42, 376
    %v90 = vlaneseq
    %v91 = vshrl.u32 %v90, 7
    %v92 = vsub.s32 0, %v91
    %v93 = vrot.slane %v36, %v92
    %v94 = vlaneseq
    %v95 = vshrl.u32 %v94, 7
    %v96 = vsub.s32 1, %v95
    %v97 = vrot.slane %v36, %v96
    %vm98 = vcmp.eq.s32.totalorder %v42, %v93
    %vm99 = vcmp.eq.s32.totalorder %v42, %v97
    %vm100 = vcmp.eq.s32.totalorder %v43, %v93
    %vm101 = vcmp.eq.s32.totalorder %v43, %v97
    %vm102 = vcmp.eq.s32.totalorder %v44, %v93
    %vm103 = vcmp.eq.s32.totalorder %v44, %v97
    %vm104 = vcmp.eq.s32.totalorder %v45, %v93
    %vm105 = vcmp.eq.s32.totalorder %v45, %v97
    %vm106 = vcmp.eq.s32.totalorder %v46, %v93
    %vm107 = vcmp.eq.s32.totalorder %v46, %v97
    %vm108 = vcmp.eq.s32.totalorder %v47, %v93
    %vm109 = vcmp.eq.s32.totalorder %v47, %v97
    %vm110 = vcmp.eq.s32.totalorder %v48, %v93
    %vm111 = vcmp.eq.s32.totalorder %v48, %v97
    %vm112 = vcmp.eq.s32.totalorder %v49, %v93
    %vm113 = vcmp.eq.s32.totalorder %v49, %v97
    %vm114 = vcmp.eq.s32.totalorder %v50, %v93
    %vm115 = vcmp.eq.s32.totalorder %v50, %v97
    %vm116 = vcmp.eq.s32.totalorder %v51, %v93
    %vm117 = vcmp.eq.s32.totalorder %v51, %v97
    %vm118 = vcmp.eq.s32.totalorder %v52, %v93
    %vm119 = vcmp.eq.s32.totalorder %v52, %v97
    %vm120 = vcmp.eq.s32.totalorder %v53, %v93
    %vm121 = vcmp.eq.s32.totalorder %v53, %v97
    %vm122 = vcmp.eq.s32.totalorder %v54, %v93
    %vm123 = vcmp.eq.s32.totalorder %v54, %v97
    %vm124 = vcmp.eq.s32.totalorder %v55, %v93
    %vm125 = vcmp.eq.s32.totalorder %v55, %v97
    %vm126 = vcmp.eq.s32.totalorder %v56, %v93
    %vm127 = vcmp.eq.s32.totalorder %v56, %v97
    %vm128 = vcmp.eq.s32.totalorder %v57, %v93
    %vm129 = vcmp.eq.s32.totalorder %v57, %v97
    %vm130 = vcmp.eq.s32.totalorder %v58, %v93
    %vm131 = vcmp.eq.s32.totalorder %v58, %v97
    %vm132 = vcmp.eq.s32.totalorder %v59, %v93
    %vm133 = vcmp.eq.s32.totalorder %v59, %v97
    %vm134 = vcmp.eq.s32.totalorder %v60, %v93
    %vm135 = vcmp.eq.s32.totalorder %v60, %v97
    %vm136 = vcmp.eq.s32.totalorder %v61, %v93
    %vm137 = vcmp.eq.s32.totalorder %v61, %v97
    %vm138 = vcmp.eq.s32.totalorder %v62, %v93
    %vm139 = vcmp.eq.s32.totalorder %v62, %v97
    %vm140 = vcmp.eq.s32.totalorder %v63, %v93
    %vm141 = vcmp.eq.s32.totalorder %v63, %v97
    %vm142 = vcmp.eq.s32.totalorder %v64, %v93
    %vm143 = vcmp.eq.s32.totalorder %v64, %v97
    %vm144 = vcmp.eq.s32.totalorder %v65, %v93
    %vm145 = vcmp.eq.s32.totalorder %v65, %v97
    %vm146 = vcmp.eq.s32.totalorder %v66, %v93
    %vm147 = vcmp.eq.s32.totalorder %v66, %v97
    %vm148 = vcmp.eq.s32.totalorder %v67, %v93
    %vm149 = vcmp.eq.s32.totalorder %v67, %v97
    %vm150 = vcmp.eq.s32.totalorder %v68, %v93
    %vm151 = vcmp.eq.s32.totalorder %v68, %v97
    %vm152 = vcmp.eq.s32.totalorder %v69, %v93
    %vm153 = vcmp.eq.s32.totalorder %v69, %v97
    %vm154 = vcmp.eq.s32.totalorder %v70, %v93
    %vm155 = vcmp.eq.s32.totalorder %v70, %v97
    %vm156 = vcmp.eq.s32.totalorder %v71, %v93
    %vm157 = vcmp.eq.s32.totalorder %v71, %v97
    %vm158 = vcmp.eq.s32.totalorder %v72, %v93
    %vm159 = vcmp.eq.s32.totalorder %v72, %v97
    %vm160 = vcmp.eq.s32.totalorder %v73, %v93
    %vm161 = vcmp.eq.s32.totalorder %v73, %v97
    %vm162 = vcmp.eq.s32.totalorder %v74, %v93
    %vm163 = vcmp.eq.s32.totalorder %v74, %v97
    %vm164 = vcmp.eq.s32.totalorder %v75, %v93
    %vm165 = vcmp.eq.s32.totalorder %v75, %v97
    %vm166 = vcmp.eq.s32.totalorder %v76, %v93
    %vm167 = vcmp.eq.s32.totalorder %v76, %v97
    %vm168 = vcmp.eq.s32.totalorder %v77, %v93
    %vm169 = vcmp.eq.s32.totalorder %v77, %v97
    %vm170 = vcmp.eq.s32.totalorder %v78, %v93
    %vm171 = vcmp.eq.s32.totalorder %v78, %v97
    %vm172 = vcmp.eq.s32.totalorder %v79, %v93
    %vm173 = vcmp.eq.s32.totalorder %v79, %v97
    %vm174 = vcmp.eq.s32.totalorder %v80, %v93
    %vm175 = vcmp.eq.s32.totalorder %v80, %v97
    %vm176 = vcmp.eq.s32.totalorder %v81, %v93
    %vm177 = vcmp.eq.s32.totalorder %v81, %v97
    %vm178 = vcmp.eq.s32.totalorder %v82, %v93
    %vm179 = vcmp.eq.s32.totalorder %v82, %v97
    %vm180 = vcmp.eq.s32.totalorder %v83, %v93
    %vm181 = vcmp.eq.s32.totalorder %v83, %v97
    %vm182 = vcmp.eq.s32.totalorder %v84, %v93
    %vm183 = vcmp.eq.s32.totalorder %v84, %v97
    %vm184 = vcmp.eq.s32.totalorder %v85, %v93
    %vm185 = vcmp.eq.s32.totalorder %v85, %v97
    %vm186 = vcmp.eq.s32.totalorder %v86, %v93
    %vm187 = vcmp.eq.s32.totalorder %v86, %v97
    %vm188 = vcmp.eq.s32.totalorder %v87, %v93
    %vm189 = vcmp.eq.s32.totalorder %v87, %v97
    %vm190 = vcmp.eq.s32.totalorder %v88, %v93
    %vm191 = vcmp.eq.s32.totalorder %v88, %v97
    %vm192 = vcmp.eq.s32.totalorder %v89, %v93
    %vm193 = vcmp.eq.s32.totalorder %v89, %v97
    %v194 = vsel %vm98, 1, 0
    %v195 = vsel %vm99, 1, 0
    %v196 = vsel %vm100, 1, 0
    %v197 = vsel %vm101, 1, 0
    %v198 = vsel %vm102, 1, 0
    %v199 = vsel %vm103, 1, 0
    %v200 = vsel %vm104, 1, 0
    %v201 = vsel %vm105, 1, 0
    %v202 = vsel %vm106, 1, 0
    %v203 = vsel %vm107, 1, 0
    %v204 = vsel %vm108, 1, 0
    %v205 = vsel %vm109, 1, 0
    %v206 = vsel %vm110, 1, 0
    %v207 = vsel %vm111, 1, 0
    %v208 = vsel %vm112, 1, 0
    %v209 = vsel %vm113, 1, 0
    %v210 = vsel %vm114, 1, 0
    %v211 = vsel %vm115, 1, 0
    %v212 = vsel %vm116, 1, 0
    %v213 = vsel %vm117, 1, 0
    %v214 = vsel %vm118, 1, 0
    %v215 = vsel %vm119, 1, 0
    %v216 = vsel %vm120, 1, 0
    %v217 = vsel %vm121, 1, 0
    %v218 = vsel %vm122, 1, 0
    %v219 = vsel %vm123, 1, 0
    %v220 = vsel %vm124, 1, 0
    %v221 = vsel %vm125, 1, 0
    %v222 = vsel %vm126, 1, 0
    %v223 = vsel %vm127, 1, 0
    %v224 = vsel %vm128, 1, 0
    %v225 = vsel %vm129, 1, 0
    %v226 = vsel %vm130, 1, 0
    %v227 = vsel %vm131, 1, 0
    %v228 = vsel %vm132, 1, 0
    %v229 = vsel %vm133, 1, 0
    %v230 = vsel %vm134, 1, 0
    %v231 = vsel %vm135, 1, 0
    %v232 = vsel %vm136, 1, 0
    %v233 = vsel %vm137, 1, 0
    %v234 = vsel %vm138, 1, 0
    %v235 = vsel %vm139, 1, 0
    %v236 = vsel %vm140, 1, 0
    %v237 = vsel %vm141, 1, 0
    %v238 = vsel %vm142, 1, 0
    %v239 = vsel %vm143, 1, 0
    %v240 = vsel %vm144, 1, 0
    %v241 = vsel %vm145, 1, 0
    %v242 = vsel %vm146, 1, 0
    %v243 = vsel %vm147, 1, 0
    %v244 = vsel %vm148, 1, 0
    %v245 = vsel %vm149, 1, 0
    %v246 = vsel %vm150, 1, 0
    %v247 = vsel %vm151, 1, 0
    %v248 = vsel %vm152, 1, 0
    %v249 = vsel %vm153, 1, 0
    %v250 = vsel %vm154, 1, 0
    %v251 = vsel %vm155, 1, 0
    %v252 = vsel %vm156, 1, 0
    %v253 = vsel %vm157, 1, 0
    %v254 = vsel %vm158, 1, 0
    %v255 = vsel %vm159, 1, 0
    %v256 = vsel %vm160, 1, 0
    %v257 = vsel %vm161, 1, 0
    %v258 = vsel %vm162, 1, 0
    %v259 = vsel %vm163, 1, 0
    %v260 = vsel %vm164, 1, 0
    %v261 = vsel %vm165, 1, 0
    %v262 = vsel %vm166, 1, 0
    %v263 = vsel %vm167, 1, 0
    %v264 = vsel %vm168, 1, 0
    %v265 = vsel %vm169, 1, 0
    %v266 = vsel %vm170, 1, 0
    %v267 = vsel %vm171, 1, 0
    %v268 = vsel %vm172, 1, 0
    %v269 = vsel %vm173, 1, 0
    %v270 = vsel %vm174, 1, 0
    %v271 = vsel %vm175, 1, 0
    %v272 = vsel %vm176, 1, 0
    %v273 = vsel %vm177, 1, 0
    %v274 = vsel %vm178, 1, 0
    %v275 = vsel %vm179, 1, 0
    %v276 = vsel %vm180, 1, 0
    %v277 = vsel %vm181, 1, 0
    %v278 = vsel %vm182, 1, 0
    %v279 = vsel %vm183, 1, 0
    %v280 = vsel %vm184, 1, 0
    %v281 = vsel %vm185, 1, 0
    %v282 = vsel %vm186, 1, 0
    %v283 = vsel %vm187, 1, 0
    %v284 = vsel %vm188, 1, 0
    %v285 = vsel %vm189, 1, 0
    %v286 = vsel %vm190, 1, 0
    %v287 = vsel %vm191, 1, 0
    %v288 = vsel %vm192, 1, 0
    %v289 = vsel %vm193, 1, 0
    %v290 = vcvt.s32.f32 %v194
    %v291 = vcvt.s32.f32 %v195
    %v292 = vcvt.s32.f32 %v196
    %v293 = vcvt.s32.f32 %v197
    %v294 = vcvt.s32.f32 %v198
    %v295 = vcvt.s32.f32 %v199
    %v296 = vcvt.s32.f32 %v200
    %v297 = vcvt.s32.f32 %v201
    %v298 = vcvt.s32.f32 %v202
    %v299 = vcvt.s32.f32 %v203
    %v300 = vcvt.s32.f32 %v204
    %v301 = vcvt.s32.f32 %v205
    %v302 = vcvt.s32.f32 %v206
    %v303 = vcvt.s32.f32 %v207
    %v304 = vcvt.s32.f32 %v208
    %v305 = vcvt.s32.f32 %v209
    %v306 = vcvt.s32.f32 %v210
    %v307 = vcvt.s32.f32 %v211
    %v308 = vcvt.s32.f32 %v212
    %v309 = vcvt.s32.f32 %v213
    %v310 = vcvt.s32.f32 %v214
    %v311 = vcvt.s32.f32 %v215
    %v312 = vcvt.s32.f32 %v216
    %v313 = vcvt.s32.f32 %v217
    %v314 = vcvt.s32.f32 %v218
    %v315 = vcvt.s32.f32 %v219
    %v316 = vcvt.s32.f32 %v220
    %v317 = vcvt.s32.f32 %v221
    %v318 = vcvt.s32.f32 %v222
    %v319 = vcvt.s32.f32 %v223
    %v320 = vcvt.s32.f32 %v224
    %v321 = vcvt.s32.f32 %v225
    %v322 = vcvt.s32.f32 %v226
    %v323 = vcvt.s32.f32 %v227
    %v324 = vcvt.s32.f32 %v228
    %v325 = vcvt.s32.f32 %v229
    %v326 = vcvt.s32.f32 %v230
    %v327 = vcvt.s32.f32 %v231
    %v328 = vcvt.s32.f32 %v232
    %v329 = vcvt.s32.f32 %v233
    %v330 = vcvt.s32.f32 %v234
    %v331 = vcvt.s32.f32 %v235
    %v332 = vcvt.s32.f32 %v236
    %v333 = vcvt.s32.f32 %v237
    %v334 = vcvt.s32.f32 %v238
    %v335 = vcvt.s32.f32 %v239
    %v336 = vcvt.s32.f32 %v240
    %v337 = vcvt.s32.f32 %v241
    %v338 = vcvt.s32.f32 %v242
    %v339 = vcvt.s32.f32 %v243
    %v340 = vcvt.s32.f32 %v244
    %v341 = vcvt.s32.f32 %v245
    %v342 = vcvt.s32.f32 %v246
    %v343 = vcvt.s32.f32 %v247
    %v344 = vcvt.s32.f32 %v248
    %v345 = vcvt.s32.f32 %v249
    %v346 = vcvt.s32.f32 %v250
    %v347 = vcvt.s32.f32 %v251
    %v348 = vcvt.s32.f32 %v252
    %v349 = vcvt.s32.f32 %v253
    %v350 = vcvt.s32.f32 %v254
    %v351 = vcvt.s32.f32 %v255
    %v352 = vcvt.s32.f32 %v256
    %v353 = vcvt.s32.f32 %v257
    %v354 = vcvt.s32.f32 %v258
    %v355 = vcvt.s32.f32 %v259
    %v356 = vcvt.s32.f32 %v260
    %v357 = vcvt.s32.f32 %v261
    %v358 = vcvt.s32.f32 %v262
    %v359 = vcvt.s32.f32 %v263
    %v360 = vcvt.s32.f32 %v264
    %v361 = vcvt.s32.f32 %v265
    %v362 = vcvt.s32.f32 %v266
    %v363 = vcvt.s32.f32 %v267
    %v364 = vcvt.s32.f32 %v268
    %v365 = vcvt.s32.f32 %v269
    %v366 = vcvt.s32.f32 %v270
    %v367 = vcvt.s32.f32 %v271
    %v368 = vcvt.s32.f32 %v272
    %v369 = vcvt.s32.f32 %v273
    %v370 = vcvt.s32.f32 %v274
    %v371 = vcvt.s32.f32 %v275
    %v372 = vcvt.s32.f32 %v276
    %v373 = vcvt.s32.f32 %v277
    %v374 = vcvt.s32.f32 %v278
    %v375 = vcvt.s32.f32 %v279
    %v376 = vcvt.s32.f32 %v280
    %v377 = vcvt.s32.f32 %v281
    %v378 = vcvt.s32.f32 %v282
    %v379 = vcvt.s32.f32 %v283
    %v380 = vcvt.s32.f32 %v284
    %v381 = vcvt.s32.f32 %v285
    %v382 = vcvt.s32.f32 %v286
    %v383 = vcvt.s32.f32 %v287
    %v384 = vcvt.s32.f32 %v288
    %v385 = vcvt.s32.f32 %v289
    %v386 = vlaneseq
    %v387 = vshrl.u32 %v386, 7
    %v388 = vsub.s32 0, %v387
    %v389 = vrot.slane %v37, %v388
    %v390 = vlaneseq
    %v391 = vshrl.u32 %v390, 7
    %v392 = vsub.s32 1, %v391
    %v393 = vrot.slane %v37, %v392
    %vm394 = vcmp.eq.s32.totalorder %v42, %v389
    %vm395 = vcmp.eq.s32.totalorder %v42, %v393
    %vm396 = vcmp.eq.s32.totalorder %v43, %v389
    %vm397 = vcmp.eq.s32.totalorder %v43, %v393
    %vm398 = vcmp.eq.s32.totalorder %v44, %v389
    %vm399 = vcmp.eq.s32.totalorder %v44, %v393
    %vm400 = vcmp.eq.s32.totalorder %v45, %v389
    %vm401 = vcmp.eq.s32.totalorder %v45, %v393
    %vm402 = vcmp.eq.s32.totalorder %v46, %v389
    %vm403 = vcmp.eq.s32.totalorder %v46, %v393
    %vm404 = vcmp.eq.s32.totalorder %v47, %v389
    %vm405 = vcmp.eq.s32.totalorder %v47, %v393
    %vm406 = vcmp.eq.s32.totalorder %v48, %v389
    %vm407 = vcmp.eq.s32.totalorder %v48, %v393
    %vm408 = vcmp.eq.s32.totalorder %v49, %v389
    %vm409 = vcmp.eq.s32.totalorder %v49, %v393
    %vm410 = vcmp.eq.s32.totalorder %v50, %v389
    %vm411 = vcmp.eq.s32.totalorder %v50, %v393
    %vm412 = vcmp.eq.s32.totalorder %v51, %v389
    %vm413 = vcmp.eq.s32.totalorder %v51, %v393
    %vm414 = vcmp.eq.s32.totalorder %v52, %v389
    %vm415 = vcmp.eq.s32.totalorder %v52, %v393
    %vm416 = vcmp.eq.s32.totalorder %v53, %v389
    %vm417 = vcmp.eq.s32.totalorder %v53, %v393
    %vm418 = vcmp.eq.s32.totalorder %v54, %v389
    %vm419 = vcmp.eq.s32.totalorder %v54, %v393
    %vm420 = vcmp.eq.s32.totalorder %v55, %v389
    %vm421 = vcmp.eq.s32.totalorder %v55, %v393
    %vm422 = vcmp.eq.s32.totalorder %v56, %v389
    %vm423 = vcmp.eq.s32.totalorder %v56, %v393
    %vm424 = vcmp.eq.s32.totalorder %v57, %v389
    %vm425 = vcmp.eq.s32.totalorder %v57, %v393
    %vm426 = vcmp.eq.s32.totalorder %v58, %v389
    %vm427 = vcmp.eq.s32.totalorder %v58, %v393
    %vm428 = vcmp.eq.s32.totalorder %v59, %v389
    %vm429 = vcmp.eq.s32.totalorder %v59, %v393
    %vm430 = vcmp.eq.s32.totalorder %v60, %v389
    %vm431 = vcmp.eq.s32.totalorder %v60, %v393
    %vm432 = vcmp.eq.s32.totalorder %v61, %v389
    %vm433 = vcmp.eq.s32.totalorder %v61, %v393
    %vm434 = vcmp.eq.s32.totalorder %v62, %v389
    %vm435 = vcmp.eq.s32.totalorder %v62, %v393
    %vm436 = vcmp.eq.s32.totalorder %v63, %v389
    %vm437 = vcmp.eq.s32.totalorder %v63, %v393
    %vm438 = vcmp.eq.s32.totalorder %v64, %v389
    %vm439 = vcmp.eq.s32.totalorder %v64, %v393
    %vm440 = vcmp.eq.s32.totalorder %v65, %v389
    %vm441 = vcmp.eq.s32.totalorder %v65, %v393
    %vm442 = vcmp.eq.s32.totalorder %v66, %v389
    %vm443 = vcmp.eq.s32.totalorder %v66, %v393
    %vm444 = vcmp.eq.s32.totalorder %v67, %v389
    %vm445 = vcmp.eq.s32.totalorder %v67, %v393
    %vm446 = vcmp.eq.s32.totalorder %v68, %v389
    %vm447 = vcmp.eq.s32.totalorder %v68, %v393
    %vm448 = vcmp.eq.s32.totalorder %v69, %v389
    %vm449 = vcmp.eq.s32.totalorder %v69, %v393
    %vm450 = vcmp.eq.s32.totalorder %v70, %v389
    %vm451 = vcmp.eq.s32.totalorder %v70, %v393
    %vm452 = vcmp.eq.s32.totalorder %v71, %v389
    %vm453 = vcmp.eq.s32.totalorder %v71, %v393
    %vm454 = vcmp.eq.s32.totalorder %v72, %v389
    %vm455 = vcmp.eq.s32.totalorder %v72, %v393
    %vm456 = vcmp.eq.s32.totalorder %v73, %v389
    %vm457 = vcmp.eq.s32.totalorder %v73, %v393
    %vm458 = vcmp.eq.s32.totalorder %v74, %v389
    %vm459 = vcmp.eq.s32.totalorder %v74, %v393
    %vm460 = vcmp.eq.s32.totalorder %v75, %v389
    %vm461 = vcmp.eq.s32.totalorder %v75, %v393
    %vm462 = vcmp.eq.s32.totalorder %v76, %v389
    %vm463 = vcmp.eq.s32.totalorder %v76, %v393
    %vm464 = vcmp.eq.s32.totalorder %v77, %v389
    %vm465 = vcmp.eq.s32.totalorder %v77, %v393
    %vm466 = vcmp.eq.s32.totalorder %v78, %v389
    %vm467 = vcmp.eq.s32.totalorder %v78, %v393
    %vm468 = vcmp.eq.s32.totalorder %v79, %v389
    %vm469 = vcmp.eq.s32.totalorder %v79, %v393
    %vm470 = vcmp.eq.s32.totalorder %v80, %v389
    %vm471 = vcmp.eq.s32.totalorder %v80, %v393
    %vm472 = vcmp.eq.s32.totalorder %v81, %v389
    %vm473 = vcmp.eq.s32.totalorder %v81, %v393
    %vm474 = vcmp.eq.s32.totalorder %v82, %v389
    %vm475 = vcmp.eq.s32.totalorder %v82, %v393
    %vm476 = vcmp.eq.s32.totalorder %v83, %v389
    %vm477 = vcmp.eq.s32.totalorder %v83, %v393
    %vm478 = vcmp.eq.s32.totalorder %v84, %v389
    %vm479 = vcmp.eq.s32.totalorder %v84, %v393
    %vm480 = vcmp.eq.s32.totalorder %v85, %v389
    %vm481 = vcmp.eq.s32.totalorder %v85, %v393
    %vm482 = vcmp.eq.s32.totalorder %v86, %v389
    %vm483 = vcmp.eq.s32.totalorder %v86, %v393
    %vm484 = vcmp.eq.s32.totalorder %v87, %v389
    %vm485 = vcmp.eq.s32.totalorder %v87, %v393
    %vm486 = vcmp.eq.s32.totalorder %v88, %v389
    %vm487 = vcmp.eq.s32.totalorder %v88, %v393
    %vm488 = vcmp.eq.s32.totalorder %v89, %v389
    %vm489 = vcmp.eq.s32.totalorder %v89, %v393
    %v490 = vsel %vm394, 1, 0
    %v491 = vsel %vm395, 1, 0
    %v492 = vsel %vm396, 1, 0
    %v493 = vsel %vm397, 1, 0
    %v494 = vsel %vm398, 1, 0
    %v495 = vsel %vm399, 1, 0
    %v496 = vsel %vm400, 1, 0
    %v497 = vsel %vm401, 1, 0
    %v498 = vsel %vm402, 1, 0
    %v499 = vsel %vm403, 1, 0
    %v500 = vsel %vm404, 1, 0
    %v501 = vsel %vm405, 1, 0
    %v502 = vsel %vm406, 1, 0
    %v503 = vsel %vm407, 1, 0
    %v504 = vsel %vm408, 1, 0
    %v505 = vsel %vm409, 1, 0
    %v506 = vsel %vm410, 1, 0
    %v507 = vsel %vm411, 1, 0
    %v508 = vsel %vm412, 1, 0
    %v509 = vsel %vm413, 1, 0
    %v510 = vsel %vm414, 1, 0
    %v511 = vsel %vm415, 1, 0
    %v512 = vsel %vm416, 1, 0
    %v513 = vsel %vm417, 1, 0
    %v514 = vsel %vm418, 1, 0
    %v515 = vsel %vm419, 1, 0
    %v516 = vsel %vm420, 1, 0
    %v517 = vsel %vm421, 1, 0
    %v518 = vsel %vm422, 1, 0
    %v519 = vsel %vm423, 1, 0
    %v520 = vsel %vm424, 1, 0
    %v521 = vsel %vm425, 1, 0
    %v522 = vsel %vm426, 1, 0
    %v523 = vsel %vm427, 1, 0
    %v524 = vsel %vm428, 1, 0
    %v525 = vsel %vm429, 1, 0
    %v526 = vsel %vm430, 1, 0
    %v527 = vsel %vm431, 1, 0
    %v528 = vsel %vm432, 1, 0
    %v529 = vsel %vm433, 1, 0
    %v530 = vsel %vm434, 1, 0
    %v531 = vsel %vm435, 1, 0
    %v532 = vsel %vm436, 1, 0
    %v533 = vsel %vm437, 1, 0
    %v534 = vsel %vm438, 1, 0
    %v535 = vsel %vm439, 1, 0
    %v536 = vsel %vm440, 1, 0
    %v537 = vsel %vm441, 1, 0
    %v538 = vsel %vm442, 1, 0
    %v539 = vsel %vm443, 1, 0
    %v540 = vsel %vm444, 1, 0
    %v541 = vsel %vm445, 1, 0
    %v542 = vsel %vm446, 1, 0
    %v543 = vsel %vm447, 1, 0
    %v544 = vsel %vm448, 1, 0
    %v545 = vsel %vm449, 1, 0
    %v546 = vsel %vm450, 1, 0
    %v547 = vsel %vm451, 1, 0
    %v548 = vsel %vm452, 1, 0
    %v549 = vsel %vm453, 1, 0
    %v550 = vsel %vm454, 1, 0
    %v551 = vsel %vm455, 1, 0
    %v552 = vsel %vm456, 1, 0
    %v553 = vsel %vm457, 1, 0
    %v554 = vsel %vm458, 1, 0
    %v555 = vsel %vm459, 1, 0
    %v556 = vsel %vm460, 1, 0
    %v557 = vsel %vm461, 1, 0
    %v558 = vsel %vm462, 1, 0
    %v559 = vsel %vm463, 1, 0
    %v560 = vsel %vm464, 1, 0
    %v561 = vsel %vm465, 1, 0
    %v562 = vsel %vm466, 1, 0
    %v563 = vsel %vm467, 1, 0
    %v564 = vsel %vm468, 1, 0
    %v565 = vsel %vm469, 1, 0
    %v566 = vsel %vm470, 1, 0
    %v567 = vsel %vm471, 1, 0
    %v568 = vsel %vm472, 1, 0
    %v569 = vsel %vm473, 1, 0
    %v570 = vsel %vm474, 1, 0
    %v571 = vsel %vm475, 1, 0
    %v572 = vsel %vm476, 1, 0
    %v573 = vsel %vm477, 1, 0
    %v574 = vsel %vm478, 1, 0
    %v575 = vsel %vm479, 1, 0
    %v576 = vsel %vm480, 1, 0
    %v577 = vsel %vm481, 1, 0
    %v578 = vsel %vm482, 1, 0
    %v579 = vsel %vm483, 1, 0
    %v580 = vsel %vm484, 1, 0
    %v581 = vsel %vm485, 1, 0
    %v582 = vsel %vm486, 1, 0
    %v583 = vsel %vm487, 1, 0
    %v584 = vsel %vm488, 1, 0
    %v585 = vsel %vm489, 1, 0
    %v586 = vcvt.s32.f32 %v490
    %v587 = vcvt.s32.f32 %v491
    %v588 = vcvt.s32.f32 %v492
    %v589 = vcvt.s32.f32 %v493
    %v590 = vcvt.s32.f32 %v494
    %v591 = vcvt.s32.f32 %v495
    %v592 = vcvt.s32.f32 %v496
    %v593 = vcvt.s32.f32 %v497
    %v594 = vcvt.s32.f32 %v498
    %v595 = vcvt.s32.f32 %v499
    %v596 = vcvt.s32.f32 %v500
    %v597 = vcvt.s32.f32 %v501
    %v598 = vcvt.s32.f32 %v502
    %v599 = vcvt.s32.f32 %v503
    %v600 = vcvt.s32.f32 %v504
    %v601 = vcvt.s32.f32 %v505
    %v602 = vcvt.s32.f32 %v506
    %v603 = vcvt.s32.f32 %v507
    %v604 = vcvt.s32.f32 %v508
    %v605 = vcvt.s32.f32 %v509
    %v606 = vcvt.s32.f32 %v510
    %v607 = vcvt.s32.f32 %v511
    %v608 = vcvt.s32.f32 %v512
    %v609 = vcvt.s32.f32 %v513
    %v610 = vcvt.s32.f32 %v514
    %v611 = vcvt.s32.f32 %v515
    %v612 = vcvt.s32.f32 %v516
    %v613 = vcvt.s32.f32 %v517
    %v614 = vcvt.s32.f32 %v518
    %v615 = vcvt.s32.f32 %v519
    %v616 = vcvt.s32.f32 %v520
    %v617 = vcvt.s32.f32 %v521
    %v618 = vcvt.s32.f32 %v522
    %v619 = vcvt.s32.f32 %v523
    %v620 = vcvt.s32.f32 %v524
    %v621 = vcvt.s32.f32 %v525
    %v622 = vcvt.s32.f32 %v526
    %v623 = vcvt.s32.f32 %v527
    %v624 = vcvt.s32.f32 %v528
    %v625 = vcvt.s32.f32 %v529
    %v626 = vcvt.s32.f32 %v530
    %v627 = vcvt.s32.f32 %v531
    %v628 = vcvt.s32.f32 %v532
    %v629 = vcvt.s32.f32 %v533
    %v630 = vcvt.s32.f32 %v534
    %v631 = vcvt.s32.f32 %v535
    %v632 = vcvt.s32.f32 %v536
    %v633 = vcvt.s32.f32 %v537
    %v634 = vcvt.s32.f32 %v538
    %v635 = vcvt.s32.f32 %v539
    %v636 = vcvt.s32.f32 %v540
    %v637 = vcvt.s32.f32 %v541
    %v638 = vcvt.s32.f32 %v542
    %v639 = vcvt.s32.f32 %v543
    %v640 = vcvt.s32.f32 %v544
    %v641 = vcvt.s32.f32 %v545
    %v642 = vcvt.s32.f32 %v546
    %v643 = vcvt.s32.f32 %v547
    %v644 = vcvt.s32.f32 %v548
    %v645 = vcvt.s32.f32 %v549
    %v646 = vcvt.s32.f32 %v550
    %v647 = vcvt.s32.f32 %v551
    %v648 = vcvt.s32.f32 %v552
    %v649 = vcvt.s32.f32 %v553
    %v650 = vcvt.s32.f32 %v554
    %v651 = vcvt.s32.f32 %v555
    %v652 = vcvt.s32.f32 %v556
    %v653 = vcvt.s32.f32 %v557
    %v654 = vcvt.s32.f32 %v558
    %v655 = vcvt.s32.f32 %v559
    %v656 = vcvt.s32.f32 %v560
    %v657 = vcvt.s32.f32 %v561
    %v658 = vcvt.s32.f32 %v562
    %v659 = vcvt.s32.f32 %v563
    %v660 = vcvt.s32.f32 %v564
    %v661 = vcvt.s32.f32 %v565
    %v662 = vcvt.s32.f32 %v566
    %v663 = vcvt.s32.f32 %v567
    %v664 = vcvt.s32.f32 %v568
    %v665 = vcvt.s32.f32 %v569
    %v666 = vcvt.s32.f32 %v570
    %v667 = vcvt.s32.f32 %v571
    %v668 = vcvt.s32.f32 %v572
    %v669 = vcvt.s32.f32 %v573
    %v670 = vcvt.s32.f32 %v574
    %v671 = vcvt.s32.f32 %v575
    %v672 = vcvt.s32.f32 %v576
    %v673 = vcvt.s32.f32 %v577
    %v674 = vcvt.s32.f32 %v578
    %v675 = vcvt.s32.f32 %v579
    %v676 = vcvt.s32.f32 %v580
    %v677 = vcvt.s32.f32 %v581
    %v678 = vcvt.s32.f32 %v582
    %v679 = vcvt.s32.f32 %v583
    %v680 = vcvt.s32.f32 %v584
    %v681 = vcvt.s32.f32 %v585
    %v682 = vsub.f32 %v290, %v586
    %v683 = vsub.f32 %v291, %v587
    %v684 = vsub.f32 %v292, %v588
    %v685 = vsub.f32 %v293, %v589
    %v686 = vsub.f32 %v294, %v590
    %v687 = vsub.f32 %v295, %v591
    %v688 = vsub.f32 %v296, %v592
    %v689 = vsub.f32 %v297, %v593
    %v690 = vsub.f32 %v298, %v594
    %v691 = vsub.f32 %v299, %v595
    %v692 = vsub.f32 %v300, %v596
    %v693 = vsub.f32 %v301, %v597
    %v694 = vsub.f32 %v302, %v598
    %v695 = vsub.f32 %v303, %v599
    %v696 = vsub.f32 %v304, %v600
    %v697 = vsub.f32 %v305, %v601
    %v698 = vsub.f32 %v306, %v602
    %v699 = vsub.f32 %v307, %v603
    %v700 = vsub.f32 %v308, %v604
    %v701 = vsub.f32 %v309, %v605
    %v702 = vsub.f32 %v310, %v606
    %v703 = vsub.f32 %v311, %v607
    %v704 = vsub.f32 %v312, %v608
    %v705 = vsub.f32 %v313, %v609
    %v706 = vsub.f32 %v314, %v610
    %v707 = vsub.f32 %v315, %v611
    %v708 = vsub.f32 %v316, %v612
    %v709 = vsub.f32 %v317, %v613
    %v710 = vsub.f32 %v318, %v614
    %v711 = vsub.f32 %v319, %v615
    %v712 = vsub.f32 %v320, %v616
    %v713 = vsub.f32 %v321, %v617
    %v714 = vsub.f32 %v322, %v618
    %v715 = vsub.f32 %v323, %v619
    %v716 = vsub.f32 %v324, %v620
    %v717 = vsub.f32 %v325, %v621
    %v718 = vsub.f32 %v326, %v622
    %v719 = vsub.f32 %v327, %v623
    %v720 = vsub.f32 %v328, %v624
    %v721 = vsub.f32 %v329, %v625
    %v722 = vsub.f32 %v330, %v626
    %v723 = vsub.f32 %v331, %v627
    %v724 = vsub.f32 %v332, %v628
    %v725 = vsub.f32 %v333, %v629
    %v726 = vsub.f32 %v334, %v630
    %v727 = vsub.f32 %v335, %v631
    %v728 = vsub.f32 %v336, %v632
    %v729 = vsub.f32 %v337, %v633
    %v730 = vsub.f32 %v338, %v634
    %v731 = vsub.f32 %v339, %v635
    %v732 = vsub.f32 %v340, %v636
    %v733 = vsub.f32 %v341, %v637
    %v734 = vsub.f32 %v342, %v638
    %v735 = vsub.f32 %v343, %v639
    %v736 = vsub.f32 %v344, %v640
    %v737 = vsub.f32 %v345, %v641
    %v738 = vsub.f32 %v346, %v642
    %v739 = vsub.f32 %v347, %v643
    %v740 = vsub.f32 %v348, %v644
    %v741 = vsub.f32 %v349, %v645
    %v742 = vsub.f32 %v350, %v646
    %v743 = vsub.f32 %v351, %v647
    %v744 = vsub.f32 %v352, %v648
    %v745 = vsub.f32 %v353, %v649
    %v746 = vsub.f32 %v354, %v650
    %v747 = vsub.f32 %v355, %v651
    %v748 = vsub.f32 %v356, %v652
    %v749 = vsub.f32 %v357, %v653
    %v750 = vsub.f32 %v358, %v654
    %v751 = vsub.f32 %v359, %v655
    %v752 = vsub.f32 %v360, %v656
    %v753 = vsub.f32 %v361, %v657
    %v754 = vsub.f32 %v362, %v658
    %v755 = vsub.f32 %v363, %v659
    %v756 = vsub.f32 %v364, %v660
    %v757 = vsub.f32 %v365, %v661
    %v758 = vsub.f32 %v366, %v662
    %v759 = vsub.f32 %v367, %v663
    %v760 = vsub.f32 %v368, %v664
    %v761 = vsub.f32 %v369, %v665
    %v762 = vsub.f32 %v370, %v666
    %v763 = vsub.f32 %v371, %v667
    %v764 = vsub.f32 %v372, %v668
    %v765 = vsub.f32 %v373, %v669
    %v766 = vsub.f32 %v374, %v670
    %v767 = vsub.f32 %v375, %v671
    %v768 = vsub.f32 %v376, %v672
    %v769 = vsub.f32 %v377, %v673
    %v770 = vsub.f32 %v378, %v674
    %v771 = vsub.f32 %v379, %v675
    %v772 = vsub.f32 %v380, %v676
    %v773 = vsub.f32 %v381, %v677
    %v774 = vsub.f32 %v382, %v678
    %v775 = vsub.f32 %v383, %v679
    %v776 = vsub.f32 %v384, %v680
    %v777 = vsub.f32 %v385, %v681
    %vm778 = vcmp.lt.s32.totalorder %v42, 2
    %v779 = vsel %vm778, 1e-06, 0.0
    %780 = vmatprep.subr.mxu0 %v683
    %781 = vmatpush1.msra.mxu0 %v682
    %782 = vmatprep.subr.mxu0 %v685
    %783 = vmatpush1.msra.mxu0 %v684
    %784 = vmatprep.subr.mxu0 %v687
    %785 = vmatpush1.msra.mxu0 %v686
    %786 = vmatprep.subr.mxu0 %v689
    %787 = vmatpush1.msra.mxu0 %v688
    %788 = vmatprep.subr.mxu0 %v691
    %789 = vmatpush1.msra.mxu0 %v690
    %790 = vmatprep.subr.mxu0 %v693
    %791 = vmatpush1.msra.mxu0 %v692
    %792 = vmatprep.subr.mxu0 %v695
    %793 = vmatpush1.msra.mxu0 %v694
    %794 = vmatprep.subr.mxu0 %v697
    %795 = vmatpush1.msra.mxu0 %v696
    %796 = vmatprep.subr.mxu0 %v699
    %797 = vmatpush1.msra.mxu0 %v698
    %798 = vmatprep.subr.mxu0 %v701
    %799 = vmatpush1.msra.mxu0 %v700
    %800 = vmatprep.subr.mxu0 %v703
    %801 = vmatpush1.msra.mxu0 %v702
    %802 = vmatprep.subr.mxu0 %v705
    %803 = vmatpush1.msra.mxu0 %v704
    %804 = vmatprep.subr.mxu0 %v707
    %805 = vmatpush1.msra.mxu0 %v706
    %806 = vmatprep.subr.mxu0 %v709
    %807 = vmatpush1.msra.mxu0 %v708
    %808 = vmatprep.subr.mxu0 %v711
    %809 = vmatpush1.msra.mxu0 %v710
    %810 = vmatprep.subr.mxu0 %v713
    %811 = vmatpush1.msra.mxu0 %v712
    %812 = vmatprep.subr.mxu0 %v715
    %813 = vmatpush1.msra.mxu0 %v714
    %814 = vmatprep.subr.mxu0 %v717
    %815 = vmatpush1.msra.mxu0 %v716
    %816 = vmatprep.subr.mxu0 %v719
    %817 = vmatpush1.msra.mxu0 %v718
    %818 = vmatprep.subr.mxu0 %v721
    %819 = vmatpush1.msra.mxu0 %v720
    %820 = vmatprep.subr.mxu0 %v723
    %821 = vmatpush1.msra.mxu0 %v722
    %822 = vmatprep.subr.mxu0 %v725
    %823 = vmatpush1.msra.mxu0 %v724
    %824 = vmatprep.subr.mxu0 %v727
    %825 = vmatpush1.msra.mxu0 %v726
    %826 = vmatprep.subr.mxu0 %v729
    %827 = vmatpush1.msra.mxu0 %v728
    %828 = vmatprep.subr.mxu0 %v731
    %829 = vmatpush1.msra.mxu0 %v730
    %830 = vmatprep.subr.mxu0 %v733
    %831 = vmatpush1.msra.mxu0 %v732
    %832 = vmatprep.subr.mxu0 %v735
    %833 = vmatpush1.msra.mxu0 %v734
    %834 = vmatprep.subr.mxu0 %v737
    %835 = vmatpush1.msra.mxu0 %v736
    %836 = vmatprep.subr.mxu0 %v739
    %837 = vmatpush1.msra.mxu0 %v738
    %838 = vmatprep.subr.mxu0 %v741
    %839 = vmatpush1.msra.mxu0 %v740
    %840 = vmatprep.subr.mxu0 %v743
    %841 = vmatpush1.msra.mxu0 %v742
    %842 = vmatprep.subr.mxu0 %v745
    %843 = vmatpush1.msra.mxu0 %v744
    %844 = vmatprep.mubr.f32.mxu0 %v39
    %845 = vmatmul.mubr.f32.gmra.mrb[0].mxu0 %v38
    %v846 = vpop.f32.mrb[0].mxu0
    %v847 = vadd.f32 %v779, %v846
    %v848 = vpop.f32.mrb[0].mxu0
    %v849 = vadd.f32 %v779, %v848
    %850 = vdwg.mxu0
    %851 = vmatprep.subr.mxu0 %v747
    %852 = vmatpush1.msra.mxu0 %v746
    %853 = vmatprep.subr.mxu0 %v749
    %854 = vmatpush1.msra.mxu0 %v748
    %855 = vmatprep.subr.mxu0 %v751
    %856 = vmatpush1.msra.mxu0 %v750
    %857 = vmatprep.subr.mxu0 %v753
    %858 = vmatpush1.msra.mxu0 %v752
    %859 = vmatprep.subr.mxu0 %v755
    %860 = vmatpush1.msra.mxu0 %v754
    %861 = vmatprep.subr.mxu0 %v757
    %862 = vmatpush1.msra.mxu0 %v756
    %863 = vmatprep.subr.mxu0 %v759
    %864 = vmatpush1.msra.mxu0 %v758
    %865 = vmatprep.subr.mxu0 %v761
    %866 = vmatpush1.msra.mxu0 %v760
    %867 = vmatprep.subr.mxu0 %v763
    %868 = vmatpush1.msra.mxu0 %v762
    %869 = vmatprep.subr.mxu0 %v765
    %870 = vmatpush1.msra.mxu0 %v764
    %871 = vmatprep.subr.mxu0 %v767
    %872 = vmatpush1.msra.mxu0 %v766
    %873 = vmatprep.subr.mxu0 %v769
    %874 = vmatpush1.msra.mxu0 %v768
    %875 = vmatprep.subr.mxu0 %v771
    %876 = vmatpush1.msra.mxu0 %v770
    %877 = vmatprep.subr.mxu0 %v773
    %878 = vmatpush1.msra.mxu0 %v772
    %879 = vmatprep.subr.mxu0 %v775
    %880 = vmatpush1.msra.mxu0 %v774
    %881 = vmatprep.subr.mxu0 %v777
    %882 = vmatpush1.msra.mxu0 %v776
    %883 = vmatprep.subr.mxu0 0.0
    %884 = vmatpush1.msra.mxu0 0.0
    %885 = vmatprep.subr.mxu0 0.0
    %886 = vmatpush1.msra.mxu0 0.0
    %887 = vmatprep.subr.mxu0 0.0
    %888 = vmatpush1.msra.mxu0 0.0
    %889 = vmatprep.subr.mxu0 0.0
    %890 = vmatpush1.msra.mxu0 0.0
    %891 = vmatprep.subr.mxu0 0.0
    %892 = vmatpush1.msra.mxu0 0.0
    %893 = vmatprep.subr.mxu0 0.0
    %894 = vmatpush1.msra.mxu0 0.0
    %895 = vmatprep.subr.mxu0 0.0
    %896 = vmatpush1.msra.mxu0 0.0
    %897 = vmatprep.subr.mxu0 0.0
    %898 = vmatpush1.msra.mxu0 0.0
    %899 = vmatprep.subr.mxu0 0.0
    %900 = vmatpush1.msra.mxu0 0.0
    %901 = vmatprep.subr.mxu0 0.0
    %902 = vmatpush1.msra.mxu0 0.0
    %903 = vmatprep.subr.mxu0 0.0
    %904 = vmatpush1.msra.mxu0 0.0
    %905 = vmatprep.subr.mxu0 0.0
    %906 = vmatpush1.msra.mxu0 0.0
    %907 = vmatprep.subr.mxu0 0.0
    %908 = vmatpush1.msra.mxu0 0.0
    %909 = vmatprep.subr.mxu0 0.0
    %910 = vmatpush1.msra.mxu0 0.0
    %911 = vmatprep.subr.mxu0 0.0
    %912 = vmatpush1.msra.mxu0 0.0
    %913 = vmatprep.subr.mxu0 0.0
    %914 = vmatpush1.msra.mxu0 0.0
    %915 = vmatprep.mubr.f32.mxu0 0.0
    %916 = vmatmul.mubr.f32.gmra.mrb[0].mxu0 %v40
    %v917 = vpop.f32.mrb[0].mxu0
    %v918 = vadd.f32 %v847, %v917
    %v919 = vpop.f32.mrb[0].mxu0
    %v920 = vadd.f32 %v849, %v919
    %921 = vdwg.mxu0
    %v922 = vmul.f32 %v918, %v918
    %v923 = vmul.f32 %v920, %v920
    %v924 = vrot.slane %v922, 4
    %v925 = vadd.f32 %v922, %v924
    %v926 = vrot.slane %v925, 2
    %v927 = vadd.f32 %v925, %v926
    %v928 = vrot.slane %v927, 1
    %v929 = vadd.f32 %v927, %v928
    %v930 = vrot.slane %v923, 4
    %v931 = vadd.f32 %v923, %v930
    %v932 = vrot.slane %v931, 2
    %v933 = vadd.f32 %v931, %v932
    %v934 = vrot.slane %v933, 1
    %v935 = vadd.f32 %v933, %v934
    %v936 = vlaneseq
    %v937 = vand.u32 %v936, 127
    %v938 = vadd.s32 %v937, 128
    %s939 = smul.u32 0, 256
    %v940 = vstv %s939
    %v941 = vadd.s32 %v937, %v940
    %v942 = vadd.s32 %v938, %v940
    %vm943 = vcmp.lt.s32.totalorder %v941, 200
    %vm944 = vcmp.lt.s32.totalorder %v942, 200
    %v945 = vadd.f32 %v929, 1.0
    %v946 = vadd.f32 %v935, 1.0
    %v947 = vrcp.pop %v945
    %v948 = vmul.f32 1.0, %v947
    %v949 = vrcp.pop %v946
    %v950 = vmul.f32 1.0, %v949
    %v951 = vsel %vm943, %v948, 0.0
    %v952 = vsel %vm944, %v950, 0.0
    %s953 = sld [smem:[#allocation3]]
    %vm954 = vcmask 1040384
    %v955 = vsel %vm954, %v951, 0.0
    %v956 = vsel %vm954, %v952, 0.0
    %v957 = vadd.f32 %v955, %v956
    %958 = vadd.xlane.f32.xlu0 %v957
    %v959 = vpop.xlane.xlu0 %958
    %v960 = vrot.slane %v959, 4
    %v961 = vadd.f32 %v959, %v960
    %v962 = vrot.slane %v961, 2
    %v963 = vadd.f32 %v961, %v962
    %v964 = vrot.slane %v963, 1
    %v965 = vadd.f32 %v963, %v964
    %s966 = vtos %v965
    %s967 = sadd.f32 %s953, %s966
    %s968 = scalar_lea.smem [#allocation3], 0
    %969 = sst [smem:[%s968]] %s967
    %v972 = vcombine.low %v951, %v952
    %v974 = vunpack.c.l.s4 1966171168
    %v975 = vunpack.c.0.s8 %v974
    %v976 = vlaneseq
    %v977 = vshrl.u32 %v976, 7
    %v978 = vsub.s32 %v975, %v977
    %v979 = vrot.slane %v972, %v978
    %v981 = vunpack.c.l.s4 1966171168
    %v982 = vunpack.c.0.s8 %v981
    %v983 = vlaneseq
    %v984 = vshrl.u32 %v983, 7
    %v985 = vsub.s32 %v982, %v984
    %v986 = vrot.slane %v979, %v985
    %s988 = smul.u32 0, 2
    %s989 = scalar_lea.vmem [#allocation2], %s988
    %v990 = vlaneseq
    %vm991 = vcmp.ge.s32.totalorder %v990, 0
    %vm992 = vcmp.lt.s32.totalorder %v990, 256
    %vm993 = vmand %vm991, %vm992
    %994 = vst.msk [vmem:[%s989] sm:$0x3] %vm993, %v986
    // Predicated region
    $region26: #{tpu_custom_call.1} parent=1 // pred_check
      %p995 = pneg %p30
    $region27: #{tpu_custom_call.1} parent=1 // pred_check_branch
      %997 = sbr.rel (%p995) target = $region29
    $region28: #{tpu_custom_call.1} parent=1 // pred_region
      %s998 = sld [smem:[#allocation3]]
      %v999 = vstv %s998
      %v1000 = vrcp.pop %v999
      %s1001 = vtos %v1000
      %v1002 = vld [vmem:[#allocation2] sm:$0x3]
      %v1003 = vstv %s1001
      %v1004 = vmul.f32 %v1002, %v1003
      %v1005 = vadd.f32 %v1004, 1e-10
      %v1006 = vlog2.pop %v1005
      %v1007 = vmul.f32 %v1006, 0.6931472
      %v1008 = vld [vmem:[%s3] sm:$0x3]
      %vm1009 = vcmp.gt.f32.partialorder %v1008, 0.0
      %v1010 = vlog2.pop %v1008
      %v1011 = vmul.f32 %v1010, 0.6931472
      %v1012 = vmul.f32 %v1008, %v1011
      %v1013 = vsel %vm1009, %v1012, 0.0
      %v1014 = vmul.f32 %v1008, %v1007
      %v1015 = vsub.f32 %v1013, %v1014
      %v1017 = vlaneseq
      %v1018 = vshrl.u32 %v1017, 7
      %v1019 = vsub.s32 0, %v1018
      %v1020 = vrot.slane %v1015, %v1019
      %v1021 = vlaneseq
      %v1022 = vshrl.u32 %v1021, 7
      %v1023 = vsub.s32 1, %v1022
      %v1024 = vrot.slane %v1015, %v1023
      %v1027 = vsel %vm954, %v1020, 0.0
      %v1028 = vsel %vm954, %v1024, 0.0
      %v1029 = vadd.f32 %v1027, %v1028
      %1030 = vadd.xlane.f32.xlu0 %v1029
      %v1031 = vpop.xlane.xlu0 %1030
      %v1032 = vrot.slane %v1031, 4
      %v1033 = vadd.f32 %v1031, %v1032
      %v1034 = vrot.slane %v1033, 2
      %v1035 = vadd.f32 %v1033, %v1034
      %v1036 = vrot.slane %v1035, 1
      %v1037 = vadd.f32 %v1035, %v1036
      %s1038 = vtos %v1037
      %s1039 = scalar_lea.smem [#allocation7], 0
      %1040 = sst [smem:[%s1039]] %s1038
    $region29: #{tpu_custom_call.1} parent=1 // pred_fallthru
      _
    // Predicated region
    $region30: #{tpu_custom_call.1} parent=1 // pred_check
      _
    $region31: #{tpu_custom_call.1} parent=1 // pred_check_branch
      %1042 = sbr.rel (0) target = $region33
    $region32: #{tpu_custom_call.1} parent=1 // pred_region
      %s1044 = ssub.s32 16, 16
      %1045 = vsyncadd [#allocation6], %s1044
      %1048 = dma.smem_to_hbm [#allocation7], 16, %s4, [#allocation6]
    $region33: #{tpu_custom_call.1} parent=1 // pred_fallthru
      _
    // Predicated region
    $region34: #{tpu_custom_call.1} parent=1 // pred_check
      _
    $region35: #{tpu_custom_call.1} parent=1 // pred_check_branch
      %1050 = sbr.rel (0) target = $region37
    $region36: #{tpu_custom_call.1} parent=1 // pred_region
      %1051 = dma.done [#allocation6], 16
    $region37: #{tpu_custom_call.1} parent=1 // pred_fallthru
      _
    %1052 = sfence
    %1053 = vsyncpa [#allocation5], 1
    %1054 = vsyncpa [#allocation6], 1

</llo_original>
